<compile_context>
chip_gen: v5e
topology: v5e:2x2
jax: 0.10.0
libtpu: 0.0.40
codegen_flags: <defaults>
</compile_context>

<pallas_src>
import functools

import jax
import jax.numpy as jnp
from jax.experimental import pallas as pl
from jax.experimental.pallas import tpu as pltpu


def _critic_kernel(xT_ref, w1_ref, b1_ref, w2_ref, b2_ref, w3_ref, b3_ref, o_ref):
    # Batch-on-lanes layout: every activation / store is lane-dense along batch.
    x = xT_ref[...].astype(jnp.bfloat16)                          # (state_dim, TB)

    # Layer 1: (hidden, state_dim) @ (state_dim, TB) on MXU, f32 accumulate.
    h1 = jnp.dot(w1_ref[...], x, preferred_element_type=jnp.float32) + b1_ref[...]
    h1 = jnp.maximum(h1, 0.0)                                     # f32 VPU ReLU

    # Layer 2: (hidden, hidden) @ (hidden, TB).
    h2 = jnp.dot(w2_ref[...], h1.astype(jnp.bfloat16),
                 preferred_element_type=jnp.float32) + b2_ref[...]
    h2 = jnp.maximum(h2, 0.0)

    # Value head (hidden -> 1): VPU broadcast-mul + sublane (XLU) reduce; the (1, TB)
    # result stays lane-dense and the MXU stays free.
    v = jnp.sum(h2 * w3_ref[...], axis=0, keepdims=True) + b3_ref[...]
    o_ref[...] = v.astype(o_ref.dtype)


def _round_up(x, m):
    return (x + m - 1) // m * m


@functools.partial(jax.jit, static_argnames=("block_batch",))
def critic_forward(x, params, *, block_batch=1024):
    """x: (B, state_dim) float32; params from init_critic_params. Returns (B, 1) f32."""
    B, state_dim = x.shape

    # Lane-aligned batch tile (multiple of 128); large tiles amortize the ~0.35us/step
    # grid overhead, capped by block_batch so intermediates stay comfortably in VMEM.
    TB = min(block_batch, _round_up(max(B, 1), 128))
    B_pad = _round_up(B, TB)

    # Transposed, lane-dense layout: batch maps to the 128-lane axis.  Pad (no-op under
    # XLA when B already aligned); padded columns are sliced away after the call.
    xT = jnp.pad(x.T, ((0, 0), (0, B_pad - B)))

    # bf16 matmul operands (f32 accumulate); biases / value-head weights stay f32.
    w1 = params["w1"].astype(jnp.bfloat16)
    w2 = params["w2"].astype(jnp.bfloat16)
    b1, b2 = params["b1"], params["b2"]
    w3, b3 = params["w3"], params["b3"]

    def resident(shape):  # same block index every step -> stays resident in VMEM
        return pl.BlockSpec(shape, lambda i: (0, 0))

    out_T = pl.pallas_call(
        _critic_kernel,
        out_shape=jax.ShapeDtypeStruct((1, B_pad), jnp.float32),
        grid=(B_pad // TB,),
        in_specs=[
            pl.BlockSpec((state_dim, TB), lambda i: (0, i)),      # streamed x tiles
            resident(w1.shape), resident(b1.shape),
            resident(w2.shape), resident(b2.shape),
            resident(w3.shape), resident(b3.shape),
        ],
        out_specs=pl.BlockSpec((1, TB), lambda i: (0, i)),        # lane-dense output
        compiler_params=pltpu.CompilerParams(
            dimension_semantics=("parallel",),                    # megacore on v7x
            vmem_limit_bytes=32 * 1024 * 1024,                    # safe on v5e/v6e/v7x
        ),
    )(xT, w1, b1, w2, b2, w3, b3)

    return out_T[:, :B].T                                         # (B, 1)


def init_critic_params(key, state_dim, hidden_dim):
    """PyTorch nn.Linear default init: U(-1/sqrt(fan_in), +1/sqrt(fan_in)).

    Weights are stored PyTorch-style (out_features, in_features); biases as column
    vectors (out_features, 1); the value-head weight as the (hidden, 1) column.
    Same distribution as the PyTorch module, just transposed storage.
    """
    ks = jax.random.split(key, 6)

    def lin(kw, kb, fan_in, fan_out):
        bound = 1.0 / jnp.sqrt(jnp.float32(fan_in))
        w = jax.random.uniform(kw, (fan_out, fan_in), jnp.float32, -bound, bound)
        b = jax.random.uniform(kb, (fan_out, 1), jnp.float32, -bound, bound)
        return w, b

    w1, b1 = lin(ks[0], ks[1], state_dim, hidden_dim)
    w2, b2 = lin(ks[2], ks[3], hidden_dim, hidden_dim)
    w3, b3 = lin(ks[4], ks[5], hidden_dim, 1)
    return {"w1": w1, "b1": b1, "w2": w2, "b2": b2, "w3": w3.T, "b3": b3}


def critic_reference(x, p):
    """Pure-f32 reference matching the PyTorch module semantics."""
    h1 = jnp.maximum(x @ p["w1"].T + p["b1"].T, 0.0)
    h2 = jnp.maximum(h1 @ p["w2"].T + p["b2"].T, 0.0)
    return h2 @ p["w3"] + p["b3"]


def critic_reference_bf16(x, p):
    """Reference mirroring the kernel's bf16-matmul / f32-accumulate numerics."""
    h1 = jnp.maximum(
        jnp.dot(x.astype(jnp.bfloat16), p["w1"].T.astype(jnp.bfloat16),
                preferred_element_type=jnp.float32) + p["b1"].T, 0.0)
    h2 = jnp.maximum(
        jnp.dot(h1.astype(jnp.bfloat16), p["w2"].T.astype(jnp.bfloat16),
                preferred_element_type=jnp.float32) + p["b2"].T, 0.0)
    return h2 @ p["w3"] + p["b3"]


if __name__ == "__main__":
    state_dim = 4      # CartPole-v1 observation dim
    hidden_dim = 32
    batch = 8

    key = jax.random.PRNGKey(0)
    k_params, k_x = jax.random.split(key)
    params = init_critic_params(k_params, state_dim, hidden_dim)
    x = jax.random.normal(k_x, (batch, state_dim), jnp.float32)

    value = jax.block_until_ready(critic_forward(x, params))
    assert value.shape == (batch, 1)

    ref_mirror = critic_reference_bf16(x, params)   # same numerics as the kernel
    ref_f32 = critic_reference(x, params)           # full-precision module semantics
    assert jnp.allclose(value, ref_mirror, atol=1e-4, rtol=1e-4), (
        float(jnp.max(jnp.abs(value - ref_mirror))))
    assert jnp.allclose(value, ref_f32, atol=5e-2, rtol=5e-2), (
        float(jnp.max(jnp.abs(value - ref_f32))))

    print("KERNEL_OK")
</pallas_src>

<mosaic_0001>
module attributes {stable_mosaic.version = 11 : i64} {
  func.func @_critic_kernel(%arg0: i32, %arg1: memref<4x128xf32, #tpu.memory_space<vmem>>, %arg2: memref<32x4xbf16, #tpu.memory_space<vmem>>, %arg3: memref<32x1xf32, #tpu.memory_space<vmem>>, %arg4: memref<32x32xbf16, #tpu.memory_space<vmem>>, %arg5: memref<32x1xf32, #tpu.memory_space<vmem>>, %arg6: memref<32x1xf32, #tpu.memory_space<vmem>>, %arg7: memref<1x1xf32, #tpu.memory_space<vmem>>, %arg8: memref<1x128xf32, #tpu.memory_space<vmem>>) attributes {dimension_semantics = [#tpu.dimension_semantics<parallel>], iteration_bounds = array<i64: 1>, scalar_prefetch = 0 : i64, scratch_operands = 0 : i64, tpu.core_type = #tpu.core_type<tc>, window_params = [{transform_indices = @transform_0, window_bounds = array<i64: 4, 128>}, {pipeline_mode = #tpu.pipeline_mode<synchronous>, transform_indices = @transform_1, window_bounds = array<i64: 32, 4>}, {pipeline_mode = #tpu.pipeline_mode<synchronous>, transform_indices = @transform_2, window_bounds = array<i64: 32, 1>}, {pipeline_mode = #tpu.pipeline_mode<synchronous>, transform_indices = @transform_3, window_bounds = array<i64: 32, 32>}, {pipeline_mode = #tpu.pipeline_mode<synchronous>, transform_indices = @transform_4, window_bounds = array<i64: 32, 1>}, {pipeline_mode = #tpu.pipeline_mode<synchronous>, transform_indices = @transform_5, window_bounds = array<i64: 32, 1>}, {pipeline_mode = #tpu.pipeline_mode<synchronous>, transform_indices = @transform_6, window_bounds = array<i64: 1, 1>}, {transform_indices = @transform_7, window_bounds = array<i64: 1, 128>}]} {
    %c0 = arith.constant 0 : index
    %c0_0 = arith.constant 0 : index
    %0 = vector.load %arg1[%c0, %c0_0] : memref<4x128xf32, #tpu.memory_space<vmem>>, vector<4x128xf32>
    %1 = arith.truncf %0 : vector<4x128xf32> to vector<4x128xbf16>
    %c0_1 = arith.constant 0 : index
    %c0_2 = arith.constant 0 : index
    %2 = vector.load %arg2[%c0_1, %c0_2] : memref<32x4xbf16, #tpu.memory_space<vmem>>, vector<32x4xbf16>
    %cst = arith.constant dense<0.000000e+00> : vector<32x128xf32>
    %3 = tpu.matmul %2, %1, %cst {dimension_numbers = #tpu.dot_dimension_numbers<[1], [0], [0], [1], [0, 0, 1, 1], [], []>} : vector<32x4xbf16>, vector<4x128xbf16>, vector<32x128xf32> -> vector<32x128xf32>
    %c0_3 = arith.constant 0 : index
    %c0_4 = arith.constant 0 : index
    %4 = vector.load %arg3[%c0_3, %c0_4] : memref<32x1xf32, #tpu.memory_space<vmem>>, vector<32x1xf32>
    %5 = vector.broadcast %4 : vector<32x1xf32> to vector<32x128xf32>
    %6 = arith.addf %3, %5 : vector<32x128xf32>
    %cst_5 = arith.constant 0.000000e+00 : f32
    %7 = vector.broadcast %cst_5 : f32 to vector<32x128xf32>
    %8 = arith.maximumf %6, %7 : vector<32x128xf32>
    %c0_6 = arith.constant 0 : index
    %c0_7 = arith.constant 0 : index
    %9 = vector.load %arg4[%c0_6, %c0_7] : memref<32x32xbf16, #tpu.memory_space<vmem>>, vector<32x32xbf16>
    %10 = arith.truncf %8 : vector<32x128xf32> to vector<32x128xbf16>
    %cst_8 = arith.constant dense<0.000000e+00> : vector<32x128xf32>
    %11 = tpu.matmul %9, %10, %cst_8 {dimension_numbers = #tpu.dot_dimension_numbers<[1], [0], [0], [1], [0, 0, 1, 1], [], []>} : vector<32x32xbf16>, vector<32x128xbf16>, vector<32x128xf32> -> vector<32x128xf32>
    %c0_9 = arith.constant 0 : index
    %c0_10 = arith.constant 0 : index
    %12 = vector.load %arg5[%c0_9, %c0_10] : memref<32x1xf32, #tpu.memory_space<vmem>>, vector<32x1xf32>
    %13 = vector.broadcast %12 : vector<32x1xf32> to vector<32x128xf32>
    %14 = arith.addf %11, %13 : vector<32x128xf32>
    %cst_11 = arith.constant 0.000000e+00 : f32
    %15 = vector.broadcast %cst_11 : f32 to vector<32x128xf32>
    %16 = arith.maximumf %14, %15 : vector<32x128xf32>
    %c0_12 = arith.constant 0 : index
    %c0_13 = arith.constant 0 : index
    %17 = vector.load %arg6[%c0_12, %c0_13] : memref<32x1xf32, #tpu.memory_space<vmem>>, vector<32x1xf32>
    %18 = vector.broadcast %17 : vector<32x1xf32> to vector<32x128xf32>
    %19 = arith.mulf %16, %18 : vector<32x128xf32>
    %cst_14 = arith.constant dense<0.000000e+00> : vector<128xf32>
    %20 = vector.multi_reduction <add>, %19, %cst_14 [0] : vector<32x128xf32> to vector<128xf32>
    %21 = vector.shape_cast %20 : vector<128xf32> to vector<1x128xf32>
    %c0_15 = arith.constant 0 : index
    %c0_16 = arith.constant 0 : index
    %22 = vector.load %arg7[%c0_15, %c0_16] : memref<1x1xf32, #tpu.memory_space<vmem>>, vector<1x1xf32>
    %23 = vector.broadcast %22 : vector<1x1xf32> to vector<1x128xf32>
    %24 = arith.addf %21, %23 : vector<1x128xf32>
    %c0_17 = arith.constant 0 : index
    %c0_18 = arith.constant 0 : index
    %25 = vector.load %arg8[%c0_17, %c0_18] : memref<1x128xf32, #tpu.memory_space<vmem>>, vector<1x128xf32>
    tpu.vector_store %arg8[%c0_17, %c0_18], %24 {strides = array<i32>} : memref<1x128xf32, #tpu.memory_space<vmem>>, vector<1x128xf32>,
    return
  }
  func.func @transform_0(%arg0: i32) -> (i32, i32) {
    %c0_i32 = arith.constant 0 : i32
    %c0_i32_0 = arith.constant 0 : i32
    return %c0_i32, %arg0 : i32, i32
  }
  func.func @transform_1(%arg0: i32) -> (i32, i32) {
    %c0_i32 = arith.constant 0 : i32
    %c0_i32_0 = arith.constant 0 : i32
    %c0_i32_1 = arith.constant 0 : i32
    return %c0_i32, %c0_i32_0 : i32, i32
  }
  func.func @transform_2(%arg0: i32) -> (i32, i32) {
    %c0_i32 = arith.constant 0 : i32
    %c0_i32_0 = arith.constant 0 : i32
    %c0_i32_1 = arith.constant 0 : i32
    return %c0_i32, %c0_i32_0 : i32, i32
  }
  func.func @transform_3(%arg0: i32) -> (i32, i32) {
    %c0_i32 = arith.constant 0 : i32
    %c0_i32_0 = arith.constant 0 : i32
    %c0_i32_1 = arith.constant 0 : i32
    return %c0_i32, %c0_i32_0 : i32, i32
  }
  func.func @transform_4(%arg0: i32) -> (i32, i32) {
    %c0_i32 = arith.constant 0 : i32
    %c0_i32_0 = arith.constant 0 : i32
    %c0_i32_1 = arith.constant 0 : i32
    return %c0_i32, %c0_i32_0 : i32, i32
  }
  func.func @transform_5(%arg0: i32) -> (i32, i32) {
    %c0_i32 = arith.constant 0 : i32
    %c0_i32_0 = arith.constant 0 : i32
    %c0_i32_1 = arith.constant 0 : i32
    return %c0_i32, %c0_i32_0 : i32, i32
  }
  func.func @transform_6(%arg0: i32) -> (i32, i32) {
    %c0_i32 = arith.constant 0 : i32
    %c0_i32_0 = arith.constant 0 : i32
    %c0_i32_1 = arith.constant 0 : i32
    return %c0_i32, %c0_i32_0 : i32, i32
  }
  func.func @transform_7(%arg0: i32) -> (i32, i32) {
    %c0_i32 = arith.constant 0 : i32
    %c0_i32_0 = arith.constant 0 : i32
    return %c0_i32, %arg0 : i32, i32
  }
}

</mosaic_0001>

<llo_original>
// kernel: critic_forward.1
$region0: #{critic_forward.1}
  #allocation0 [shape = 'u32[]', space=smem, size = 0x4, offset = 0x4, fixed_abs, tag = 'smem constant byte address 0x4 - core index']
  #allocation1 [shape = 'u32[72,128]{1,0:T(1,128)}', space=vmem, size = 0x9000, scoped, tag = 'internal scratch']
  #allocation2 [shape = 'f32[1,1]{1,0:T(1,128)S(1)}', space=vmem, size = 0x200, scoped, tag = 'scoped memory for critic_forward.1']
  %s0 = inlined_call_operand.vmem [shape: f32[4,128], index: 0, kind: input, shape index: {}]
  %s1 = inlined_call_operand.vmem [shape: bf16[32,4], index: 1, kind: input, shape index: {}]
  %s2 = inlined_call_operand.vmem [shape: f32[32,1], index: 2, kind: input, shape index: {}]
  %s3 = inlined_call_operand.vmem [shape: bf16[32,32], index: 3, kind: input, shape index: {}]
  %s4 = inlined_call_operand.vmem [shape: f32[32,1], index: 4, kind: input, shape index: {}]
  %s5 = inlined_call_operand.vmem [shape: f32[32,1], index: 5, kind: input, shape index: {}]
  %s6 = inlined_call_operand.<no memory space> [shape: f32[1,1], index: 6, kind: input, shape index: {}]
  %s7 = inlined_call_operand.vmem [shape: f32[1,128], index: 7, kind: output, shape index: {}]
  %s8 = sld [smem:[#allocation0]]
  $region38: #{critic_forward.1} parent=0
    _
  %s10 = ssub.s32 1, %s8
  %s11 = scalar_select 0, %s10, %s8
  %v12 = vstv %s6
  %13 = vst [vmem:[#allocation2] sm:$0x1] %v12
  // Predicated region
  $region2: #{critic_forward.1} parent=0 // pred_check
    _
  $region3: #{critic_forward.1} parent=0 // pred_check_branch
    %15 = sbr.rel (0) target = $region5
  $region4: #{critic_forward.1} parent=0 // pred_region
    _
  $region5: #{critic_forward.1} parent=0 // pred_fallthru
    _
  // Predicated region
  $region6: #{critic_forward.1} parent=0 // pred_check
    _
  $region7: #{critic_forward.1} parent=0 // pred_check_branch
    %17 = sbr.rel (0) target = $region9
  $region8: #{critic_forward.1} parent=0 // pred_region
    _
  $region9: #{critic_forward.1} parent=0 // pred_fallthru
    _
  // Predicated region
  $region10: #{critic_forward.1} parent=0 // pred_check
    _
  $region11: #{critic_forward.1} parent=0 // pred_check_branch
    %19 = sbr.rel (0) target = $region13
  $region12: #{critic_forward.1} parent=0 // pred_region
    _
  $region13: #{critic_forward.1} parent=0 // pred_fallthru
    _
  // Predicated region
  $region14: #{critic_forward.1} parent=0 // pred_check
    _
  $region15: #{critic_forward.1} parent=0 // pred_check_branch
    %21 = sbr.rel (0) target = $region17
  $region16: #{critic_forward.1} parent=0 // pred_region
    _
  $region17: #{critic_forward.1} parent=0 // pred_fallthru
    _
  // Predicated region
  $region18: #{critic_forward.1} parent=0 // pred_check
    _
  $region19: #{critic_forward.1} parent=0 // pred_check_branch
    %23 = sbr.rel (0) target = $region21
  $region20: #{critic_forward.1} parent=0 // pred_region
    _
  $region21: #{critic_forward.1} parent=0 // pred_fallthru
    _
  // Predicated region
  $region22: #{critic_forward.1} parent=0 // pred_check
    _
  $region23: #{critic_forward.1} parent=0 // pred_check_branch
    %25 = sbr.rel (0) target = $region25
  $region24: #{critic_forward.1} parent=0 // pred_region
    _
  $region25: #{critic_forward.1} parent=0 // pred_fallthru
    _
  // Predicated region
  $region26: #{critic_forward.1} parent=0 // pred_check
    _
  $region27: #{critic_forward.1} parent=0 // pred_check_branch
    %27 = sbr.rel (0) target = $region29
  $region28: #{critic_forward.1} parent=0 // pred_region
    _
  $region29: #{critic_forward.1} parent=0 // pred_fallthru
    _
  %v29 = vld [vmem:[%s0] sm:$0xf]
  %v30 = vpack.c.bf16 %v29, %v29
  %v31 = vld [vmem:[%s1] sm:$0xf]
  %v32 = vld [vmem:[%s1 + $0x4] sm:$0xf]
  %v33 = vld [vmem:[%s1 + $0x8] sm:$0xf]
  %v34 = vld [vmem:[%s1 + $0xc] sm:$0xf]
  %v35 = vld [vmem:[%s2] sm:$0xff]
  %v36 = vld [vmem:[%s2 + $0x8] sm:$0xff]
  %v37 = vld [vmem:[%s2 + $0x10] sm:$0xff]
  %v38 = vld [vmem:[%s2 + $0x18] sm:$0xff]
  %40 = vset.pattern.permute.xlu0 0
  %41 = vperm.xlu0 %40, %v35
  %v42 = vpop.permute.xlu0 %41
  %45 = vset.pattern.permute.xlu0 0
  %46 = vperm.xlu0 %45, %v36
  %v47 = vpop.permute.xlu0 %46
  %50 = vset.pattern.permute.xlu0 0
  %51 = vperm.xlu0 %50, %v37
  %v52 = vpop.permute.xlu0 %51
  %55 = vset.pattern.permute.xlu0 0
  %56 = vperm.xlu0 %55, %v38
  %v57 = vpop.permute.xlu0 %56
  %v63 = vunpack.c.l.b16 %v31
  %v64 = vunpack.c.l.b16 %v32
  %v65 = vunpack.c.l.b16 %v33
  %v66 = vunpack.c.l.b16 %v34
  %v67 = vpack.c.b16 %v64, %v63
  %v68 = vpack.c.b16 %v66, %v65
  %vm69 = vcmask 31744
  %v71 = vsel %vm69, %v67, 0
  %v74 = vsel %vm69, %v68, 0
  %vm76 = vcmask 1041408
  %v78 = vsel %vm76, %v30, 0
  %80 = vmatpush.bf16.msra.mxu0 0
  %81 = vmatpush.bf16.msra.mxu0 0
  %82 = vmatpush.bf16.msra.mxu0 0
  %83 = vmatpush.bf16.msra.mxu0 0
  %84 = vmatpush.bf16.msra.mxu0 0
  %85 = vmatpush.bf16.msra.mxu0 0
  %86 = vmatpush.bf16.msra.mxu0 0
  %87 = vmatpush.bf16.msra.mxu0 %v78
  %88 = vmatmul.bf16.gmra.mxu0 %v71
  %v89 = vpop.f32.mrf.mxu0
  %v90 = vadd.f32 %v42, %v89
  %v91 = vpop.f32.mrf.mxu0
  %v92 = vadd.f32 %v47, %v91
  %93 = vmatmul.bf16.gmra.mxu0 %v74
  %v94 = vpop.f32.mrf.mxu0
  %v95 = vadd.f32 %v52, %v94
  %v96 = vpop.f32.mrf.mxu0
  %v97 = vadd.f32 %v57, %v96
  %98 = vdwg.mxu0
  %v99 = vmax.f32 %v90, 0.0
  %v100 = vmax.f32 %v92, 0.0
  %v101 = vmax.f32 %v95, 0.0
  %v102 = vmax.f32 %v97, 0.0
  %v103 = vld [vmem:[%s3] sm:$0xf]
  %v104 = vld [vmem:[%s3 + $0x4] sm:$0xf]
  %v105 = vld [vmem:[%s3 + $0x8] sm:$0xf]
  %v106 = vld [vmem:[%s3 + $0xc] sm:$0xf]
  %v107 = vpack.c.bf16 %v100, %v99
  %v108 = vpack.c.bf16 %v102, %v101
  %v109 = vld [vmem:[%s4] sm:$0xff]
  %v110 = vld [vmem:[%s4 + $0x8] sm:$0xff]
  %v111 = vld [vmem:[%s4 + $0x10] sm:$0xff]
  %v112 = vld [vmem:[%s4 + $0x18] sm:$0xff]
  %114 = vset.pattern.permute.xlu0 0
  %115 = vperm.xlu0 %114, %v109
  %v116 = vpop.permute.xlu0 %115
  %119 = vset.pattern.permute.xlu0 0
  %120 = vperm.xlu0 %119, %v110
  %v121 = vpop.permute.xlu0 %120
  %124 = vset.pattern.permute.xlu0 0
  %125 = vperm.xlu0 %124, %v111
  %v126 = vpop.permute.xlu0 %125
  %129 = vset.pattern.permute.xlu0 0
  %130 = vperm.xlu0 %129, %v112
  %v131 = vpop.permute.xlu0 %130
  %v137 = vunpack.c.l.b16 %v103
  %v138 = vunpack.c.l.b16 %v104
  %v139 = vunpack.c.l.b16 %v105
  %v140 = vunpack.c.l.b16 %v106
  %v141 = vpack.c.b16 %v138, %v137
  %v142 = vpack.c.b16 %v140, %v139
  %vm143 = vcmask 261120
  %v145 = vsel %vm143, %v141, 0
  %v148 = vsel %vm143, %v142, 0
  %150 = vmatpush.bf16.msra.mxu0 0
  %151 = vmatpush.bf16.msra.mxu0 0
  %152 = vmatpush.bf16.msra.mxu0 0
  %153 = vmatpush.bf16.msra.mxu0 0
  %154 = vmatpush.bf16.msra.mxu0 0
  %155 = vmatpush.bf16.msra.mxu0 0
  %156 = vmatpush.bf16.msra.mxu0 %v108
  %157 = vmatpush.bf16.msra.mxu0 %v107
  %158 = vmatmul.bf16.gmra.mxu0 %v145
  %v159 = vpop.f32.mrf.mxu0
  %v160 = vadd.f32 %v116, %v159
  %v161 = vpop.f32.mrf.mxu0
  %v162 = vadd.f32 %v121, %v161
  %163 = vmatmul.bf16.gmra.mxu0 %v148
  %v164 = vpop.f32.mrf.mxu0
  %v165 = vadd.f32 %v126, %v164
  %v166 = vpop.f32.mrf.mxu0
  %v167 = vadd.f32 %v131, %v166
  %168 = vdwg.mxu0
  %v169 = vmax.f32 %v160, 0.0
  %v170 = vmax.f32 %v162, 0.0
  %v171 = vmax.f32 %v165, 0.0
  %v172 = vmax.f32 %v167, 0.0
  %v173 = vld [vmem:[%s5] sm:$0xff]
  %v174 = vld [vmem:[%s5 + $0x8] sm:$0xff]
  %v175 = vld [vmem:[%s5 + $0x10] sm:$0xff]
  %v176 = vld [vmem:[%s5 + $0x18] sm:$0xff]
  %178 = vset.pattern.permute.xlu0 0
  %179 = vperm.xlu0 %178, %v173
  %v180 = vpop.permute.xlu0 %179
  %183 = vset.pattern.permute.xlu0 0
  %184 = vperm.xlu0 %183, %v174
  %v185 = vpop.permute.xlu0 %184
  %188 = vset.pattern.permute.xlu0 0
  %189 = vperm.xlu0 %188, %v175
  %v190 = vpop.permute.xlu0 %189
  %193 = vset.pattern.permute.xlu0 0
  %194 = vperm.xlu0 %193, %v176
  %v195 = vpop.permute.xlu0 %194
  %v197 = vmul.f32 %v169, %v180
  %v198 = vmul.f32 %v170, %v185
  %v199 = vmul.f32 %v171, %v190
  %v200 = vmul.f32 %v172, %v195
  %v201 = vadd.f32 %v197, %v198
  %v202 = vadd.f32 %v201, %v199
  %v203 = vadd.f32 %v202, %v200
  %v204 = vrot.slane %v203, 4
  %v205 = vadd.f32 %v203, %v204
  %v206 = vrot.slane %v205, 2
  %v207 = vadd.f32 %v205, %v206
  %v208 = vrot.slane %v207, 1
  %v209 = vadd.f32 %v207, %v208
  %v210 = vld [vmem:[#allocation2] sm:$0x1]
  %212 = vset.pattern.permute.xlu0 0
  %213 = vperm.xlu0 %212, %v210
  %v214 = vpop.permute.xlu0 %213
  %v216 = vperm.slane %v214, 0
  %v217 = vadd.f32 %v209, %v216
  %218 = vst [vmem:[%s7] sm:$0x1] %v217
  // Predicated region
  $region30: #{critic_forward.1} parent=0 // pred_check
    _
  $region31: #{critic_forward.1} parent=0 // pred_check_branch
    %220 = sbr.rel (0) target = $region33
  $region32: #{critic_forward.1} parent=0 // pred_region
    _
  $region33: #{critic_forward.1} parent=0 // pred_fallthru
    _
  // Predicated region
  $region34: #{critic_forward.1} parent=0 // pred_check
    _
  $region35: #{critic_forward.1} parent=0 // pred_check_branch
    %222 = sbr.rel (0) target = $region37
  $region36: #{critic_forward.1} parent=0 // pred_region
    _
  $region37: #{critic_forward.1} parent=0 // pred_fallthru
    _

</llo_original>
